<compile_context>
chip_gen: v5e
topology: v5e:2x2
jax: 0.10.0
libtpu: 0.0.40
codegen_flags: <defaults>
</compile_context>

<pallas_src>
import jax
import jax.numpy as jnp
from jax import lax
from jax.experimental import pallas as pl
from jax.experimental.pallas import tpu as pltpu

NEG = -1.0e30                    # finite stand-in for -inf (NaN-free log space)
ZERO_INF_THRESH = 0.5 * (-NEG)   # zero_infinity threshold derived from NEG


def _round_up(x, m):
    return (x + m - 1) // m * m


def _logadd(a, b):
    m = jnp.maximum(a, b)
    return m + jnp.log(jnp.exp(a - m) + jnp.exp(b - m))


# ----------------------------------------------------------------------------
# Kernel 1: fused Focal loss (md) + masked cross-entropy (pr), tiled over rows.
# Emits per-tile partials [focal_sum, ce_sum, ce_count] in a lane-dense
# (8, 128) output tile; padded rows carry target -1 (focal) / ignore_index (CE).
# ----------------------------------------------------------------------------
def make_md_pr_kernel(gamma, ignore_index):
    def kernel(md_ref, mdt_ref, pr_ref, prt_ref, out_ref):
        # ---------------- focal (md) partial sum ----------------
        x = md_ref[...].astype(jnp.float32)                   # (Tm, Cmd)
        t = mdt_ref[...]                                       # (Tm, 1) int32
        mx = jnp.max(x, axis=1, keepdims=True)
        lse = mx + jnp.log(jnp.sum(jnp.exp(x - mx), axis=1, keepdims=True))
        col = lax.broadcasted_iota(jnp.int32, x.shape, 1)
        tgt = jnp.sum(jnp.where(col == t, x, 0.0), axis=1, keepdims=True)
        ce = lse - tgt                                         # (Tm, 1)
        valid = (t >= 0).astype(jnp.float32)                   # pad rows == -1
        pt = jnp.exp(-ce)
        # NOTE: if rounding gives pt > 1, base is clamped to 0 (factor = 0)
        # instead of PyTorch's (1-pt)**gamma which would NaN for float gamma.
        base = jnp.maximum(1.0 - pt, 0.0)
        factor = jnp.where(base > 0.0,
                           jnp.exp(gamma * jnp.log(jnp.maximum(base, 1e-30))),
                           0.0)
        fsum = jnp.sum(factor * ce * valid)

        # ---------------- masked CE (pr) partial sum / count ----------------
        y = pr_ref[...].astype(jnp.float32)                    # (Tm, Cpr)
        u = prt_ref[...]                                        # (Tm, 1) int32
        my = jnp.max(y, axis=1, keepdims=True)
        lse2 = my + jnp.log(jnp.sum(jnp.exp(y - my), axis=1, keepdims=True))
        col2 = lax.broadcasted_iota(jnp.int32, y.shape, 1)
        tgt2 = jnp.sum(jnp.where(col2 == u, y, 0.0), axis=1, keepdims=True)
        ce2 = lse2 - tgt2
        valid2 = (u != ignore_index).astype(jnp.float32)
        cesum = jnp.sum(ce2 * valid2)
        cecnt = jnp.sum(valid2)

        # lane-dense partial output tile: [fsum, cesum, cecnt, 0, 0, ...]
        lane = lax.broadcasted_iota(jnp.int32, (8, 128), 1)
        tile = jnp.where(lane == 0, fsum,
               jnp.where(lane == 1, cesum,
               jnp.where(lane == 2, cecnt, 0.0)))
        out_ref[0] = tile
    return kernel


# ----------------------------------------------------------------------------
# Kernel 2: CTC loss (alpha forward recursion, zero_infinity, mean reduction).
# Layout: states on sublanes, batch on lanes.
#   lp_ref    : (TB, S2p, N)  per-extended-state emission log-probs (time block)
#   skip_ref  : (S2p, N) int32  1 where the s-2 transition is allowed
#   inlen_ref : (1, N) int32    encoder output lengths
#   tlen_ref  : (1, N) int32    target lengths
#   alpha_ref : (S2p, N) f32    VMEM scratch carried across time blocks
# ----------------------------------------------------------------------------
def make_ctc_kernel(TB, S2p, N):
    def kernel(lp_ref, skip_ref, inlen_ref, tlen_ref, out_ref, alpha_ref):
        blk = pl.program_id(0)
        skip = skip_ref[...] > 0                               # (S2p, N)
        inlen = inlen_ref[...]                                 # (1, N)
        tlen = tlen_ref[...]                                   # (1, N)
        row = lax.broadcasted_iota(jnp.int32, (S2p, N), 0)

        # t = 0 initialisation: states 0 (blank) and 1 (first label) only.
        @pl.when(blk == 0)
        def _():
            e0 = lp_ref[0].astype(jnp.float32)
            alpha_ref[...] = jnp.where(
                (row == 0) | ((row == 1) & (tlen >= 1)), e0, NEG)

        def step(tt, alpha):
            t = blk * TB + tt
            # s-1 / s-2 shifted reads via sublane rolls + boundary masks
            a1 = jnp.where(row >= 1, pltpu.roll(alpha, 1, 0), NEG)
            a2 = jnp.where(row >= 2, pltpu.roll(alpha, 2, 0), NEG)
            cand = _logadd(alpha, a1)
            cand = jnp.where(skip, _logadd(cand, a2), cand)
            new = cand + lp_ref[tt].astype(jnp.float32)
            keep = (t >= 1) & (t < inlen)      # freeze t=0 / finished samples
            return jnp.where(keep, new, alpha)

        alpha = lax.fori_loop(0, TB, step, alpha_ref[...], unroll=True)
        alpha_ref[...] = alpha

        @pl.when(blk == pl.num_programs(0) - 1)
        def _():
            a_last = jnp.sum(jnp.where(row == 2 * tlen, alpha, 0.0),
                             axis=0, keepdims=True)            # (1, N)
            a_prev = jnp.sum(jnp.where(row == 2 * tlen - 1, alpha, 0.0),
                             axis=0, keepdims=True)
            ll = jnp.where(tlen == 0, a_last, _logadd(a_last, a_prev))
            loss = -ll
            loss = jnp.where(loss > ZERO_INF_THRESH, 0.0, loss)  # zero_infinity
            norm = loss / jnp.maximum(tlen, 1).astype(jnp.float32)
            out_ref[...] = jnp.sum(norm, keepdims=True) / N
    return kernel


# ----------------------------------------------------------------------------
# JointLoss forward (glue + pallas_call wrappers)
# ----------------------------------------------------------------------------
def joint_loss_forward(encoder_log_probs, pr_log_probs, encoder_output_lengths,
                       r_os, r_os_lengths, md_log_probs, score, *,
                       ignore_index, blank_id,
                       ctc_weight=0.3, cross_entropy_weight=0.7,
                       md_weight=0.7, pr_weight=0.3, gamma=1.0):
    T, N, C = encoder_log_probs.shape
    S = r_os.shape[1]
    S2 = 2 * S + 1
    S2p = _round_up(S2, 8)

    # ----------------- fused focal (md) + masked-CE (pr) -----------------
    M = pr_log_probs.shape[0]
    Cmd = md_log_probs.shape[1]
    Cpr = pr_log_probs.shape[1]
    md_tgt = score.reshape(-1, 1).astype(jnp.int32)
    pr_tgt = r_os.reshape(-1, 1).astype(jnp.int32)

    per_row_bytes = (Cmd * md_log_probs.dtype.itemsize
                     + Cpr * pr_log_probs.dtype.itemsize)
    # Budget sized for v7x's scoped VMEM with double-buffered input tiles.
    tile_m = max(8, min(1024, (8 << 20) // max(2 * per_row_bytes, 1)))
    tile_m = (tile_m // 8) * 8
    tile_m = min(tile_m, _round_up(M, 8))
    m_pad = _round_up(M, tile_m)
    n_tiles = m_pad // tile_m

    md_logits = jnp.pad(md_log_probs, ((0, m_pad - M), (0, 0)))
    pr_logits = jnp.pad(pr_log_probs, ((0, m_pad - M), (0, 0)))
    md_tgt = jnp.pad(md_tgt, ((0, m_pad - M), (0, 0)), constant_values=-1)
    pr_tgt = jnp.pad(pr_tgt, ((0, m_pad - M), (0, 0)),
                     constant_values=ignore_index)

    parts = pl.pallas_call(
        make_md_pr_kernel(gamma, ignore_index),
        out_shape=jax.ShapeDtypeStruct((n_tiles, 8, 128), jnp.float32),
        grid=(n_tiles,),
        in_specs=[
            pl.BlockSpec((tile_m, Cmd), lambda i: (i, 0)),
            pl.BlockSpec((tile_m, 1), lambda i: (i, 0)),
            pl.BlockSpec((tile_m, Cpr), lambda i: (i, 0)),
            pl.BlockSpec((tile_m, 1), lambda i: (i, 0)),
        ],
        out_specs=pl.BlockSpec((1, 8, 128), lambda i: (i, 0, 0)),
        compiler_params=pltpu.CompilerParams(
            dimension_semantics=("parallel",)),
    )(md_logits, md_tgt, pr_logits, pr_tgt)

    fsum = jnp.sum(parts[:, 0, 0])
    cesum = jnp.sum(parts[:, 0, 1])
    cecnt = jnp.sum(parts[:, 0, 2])
    md_loss = fsum / M
    # NOTE: if every target equals ignore_index, cecnt == 0 and ce_loss is
    # NaN — this matches PyTorch's CrossEntropyLoss(reduction='mean').
    ce_loss = cesum / cecnt

    # ----------------------------- CTC loss ------------------------------
    ext = jnp.full((N, S2), blank_id, jnp.int32).at[:, 1::2].set(
        r_os.astype(jnp.int32))
    # TODO(synk): the per-state emission gather still runs as XLA
    # take_along_axis; fusing it in-kernel (streaming (T_blk, N, C) blocks)
    # would remove the (T, S2, N) HBM intermediate.
    lp_ext = jnp.take_along_axis(
        encoder_log_probs,
        jnp.broadcast_to(ext[None, :, :], (T, N, S2)), axis=2)     # (T, N, S2)
    lp_ext = jnp.transpose(lp_ext, (0, 2, 1))                       # (T, S2, N)

    TB = 16                                      # time steps per grid block
    t_pad = _round_up(T, TB)
    lp_ext = jnp.pad(lp_ext, ((0, t_pad - T), (0, S2p - S2), (0, 0)))

    ext_m2 = jnp.concatenate(
        [jnp.full((N, 2), blank_id, jnp.int32), ext[:, :-2]], axis=1)
    pos = jnp.arange(S2)[None, :]
    skip = ((ext != blank_id) & (ext != ext_m2) & (pos >= 2)).astype(jnp.int32)
    skip = jnp.pad(skip.T, ((0, S2p - S2), (0, 0)))                 # (S2p, N)
    inlen = encoder_output_lengths.reshape(1, N).astype(jnp.int32)
    tlen = r_os_lengths.reshape(1, N).astype(jnp.int32)

    ctc_loss = pl.pallas_call(
        make_ctc_kernel(TB, S2p, N),
        out_shape=jax.ShapeDtypeStruct((1, 1), jnp.float32),
        grid=(t_pad // TB,),
        in_specs=[
            pl.BlockSpec((TB, S2p, N), lambda b: (b, 0, 0)),
            pl.BlockSpec((S2p, N), lambda b: (0, 0)),
            pl.BlockSpec((1, N), lambda b: (0, 0)),
            pl.BlockSpec((1, N), lambda b: (0, 0)),
        ],
        out_specs=pl.BlockSpec((1, 1), lambda b: (0, 0)),
        scratch_shapes=[pltpu.VMEM((S2p, N), jnp.float32)],
        compiler_params=pltpu.CompilerParams(
            dimension_semantics=("arbitrary",)),
    )(lp_ext, skip, inlen, tlen)[0, 0]

    # ----- weighted combination (matches JointLoss.forward; the zero-weight
    # Python short-circuits of the reference module are not specialised) -----
    pr_loss = cross_entropy_weight * ce_loss + ctc_weight * ctc_loss
    loss = md_weight * md_loss + pr_weight * pr_loss
    return loss, pr_loss, md_loss


if __name__ == "__main__":
    key = jax.random.PRNGKey(0)
    k1, k2, k3, k4, k5 = jax.random.split(key, 5)

    T, N, C = 16, 2, 16       # encoder time steps, batch, vocab size
    S = 6                     # max target length
    IGNORE, BLANK = 0, 1      # ignore_index (pad) and CTC blank id

    # encoder_log_probs: (T, N, C) already log-softmaxed (PyTorch CTC convention)
    encoder_log_probs = jax.nn.log_softmax(
        jax.random.normal(k1, (T, N, C)), axis=-1)
    # decoder (pr) log-probs: (N*S, C)  (F.cross_entropy re-applies log_softmax,
    # which the CE kernel reproduces exactly)
    pr_log_probs = jax.nn.log_softmax(
        jax.random.normal(k2, (N * S, C)), axis=-1)
    encoder_output_lengths = jnp.array([16, 12], dtype=jnp.int32)

    r_os_lengths = jnp.array([6, 4], dtype=jnp.int32)
    raw_tgt = jax.random.randint(k3, (N, S), 2, C)      # avoid pad / blank ids
    pos = jnp.arange(S)[None, :]
    r_os = jnp.where(pos < r_os_lengths[:, None], raw_tgt, IGNORE).astype(jnp.int32)

    # md (mispronunciation detection): binary classification per token
    md_log_probs = jax.nn.log_softmax(jax.random.normal(k4, (N * S, 2)), axis=-1)
    score = jax.random.randint(k5, (N * S,), 0, 2).astype(jnp.int32)

    loss, pr_loss, md_loss = joint_loss_forward(
        encoder_log_probs, pr_log_probs, encoder_output_lengths,
        r_os, r_os_lengths, md_log_probs, score,
        ignore_index=IGNORE, blank_id=BLANK,
        ctc_weight=0.3, cross_entropy_weight=0.7,
        md_weight=0.7, pr_weight=0.3, gamma=1.0)

    jax.block_until_ready((loss, pr_loss, md_loss))
    print("KERNEL_OK")
</pallas_src>

<mosaic_0001>
module attributes {stable_mosaic.version = 11 : i64} {
  func.func @kernel(%arg0: i32, %arg1: memref<16x2xf32, #tpu.memory_space<vmem>>, %arg2: memref<16x1xi32, #tpu.memory_space<vmem>>, %arg3: memref<16x16xf32, #tpu.memory_space<vmem>>, %arg4: memref<16x1xi32, #tpu.memory_space<vmem>>, %arg5: memref<1x8x128xf32, #tpu.memory_space<vmem>>) attributes {dimension_semantics = [#tpu.dimension_semantics<parallel>], iteration_bounds = array<i64: 1>, scalar_prefetch = 0 : i64, scratch_operands = 0 : i64, tpu.core_type = #tpu.core_type<tc>, window_params = [{transform_indices = @transform_0, window_bounds = array<i64: 16, 2>}, {transform_indices = @transform_1, window_bounds = array<i64: 16, 1>}, {transform_indices = @transform_2, window_bounds = array<i64: 16, 16>}, {transform_indices = @transform_3, window_bounds = array<i64: 16, 1>}, {transform_indices = @transform_4, window_bounds = array<i64: 1, 8, 128>}]} {
    %c0 = arith.constant 0 : index
    %c0_0 = arith.constant 0 : index
    %0 = vector.load %arg1[%c0, %c0_0] : memref<16x2xf32, #tpu.memory_space<vmem>>, vector<16x2xf32>
    %c0_1 = arith.constant 0 : index
    %c0_2 = arith.constant 0 : index
    %1 = vector.load %arg2[%c0_1, %c0_2] : memref<16x1xi32, #tpu.memory_space<vmem>>, vector<16x1xi32>
    %cst = arith.constant dense<0xFF800000> : vector<16xf32>
    %2 = vector.multi_reduction <maximumf>, %0, %cst [1] : vector<16x2xf32> to vector<16xf32>
    %3 = vector.shape_cast %2 : vector<16xf32> to vector<16x1xf32>
    %4 = vector.broadcast %3 : vector<16x1xf32> to vector<16x2xf32>
    %5 = arith.subf %0, %4 : vector<16x2xf32>
    %6 = math.exp %5 : vector<16x2xf32>
    %cst_3 = arith.constant dense<0.000000e+00> : vector<16xf32>
    %7 = vector.multi_reduction <add>, %6, %cst_3 [1] : vector<16x2xf32> to vector<16xf32>
    %8 = vector.shape_cast %7 : vector<16xf32> to vector<16x1xf32>
    %9 = math.log %8 : vector<16x1xf32>
    %10 = arith.addf %3, %9 : vector<16x1xf32>
    %11 = tpu.iota {dimensions = array<i32: 1>} : vector<16x2xi32>
    %12 = vector.broadcast %1 : vector<16x1xi32> to vector<16x2xi32>
    %13 = arith.cmpi eq, %11, %12 : vector<16x2xi32>
    %cst_4 = arith.constant 0.000000e+00 : f32
    %14 = vector.broadcast %cst_4 : f32 to vector<16x2xf32>
    %15 = arith.select %13, %0, %14 : vector<16x2xi1>, vector<16x2xf32>
    %cst_5 = arith.constant dense<0.000000e+00> : vector<16xf32>
    %16 = vector.multi_reduction <add>, %15, %cst_5 [1] : vector<16x2xf32> to vector<16xf32>
    %17 = vector.shape_cast %16 : vector<16xf32> to vector<16x1xf32>
    %18 = arith.subf %10, %17 : vector<16x1xf32>
    %c0_i32 = arith.constant 0 : i32
    %19 = vector.broadcast %c0_i32 : i32 to vector<16x1xi32>
    %20 = arith.cmpi sge, %1, %19 : vector<16x1xi32>
    %21 = arith.extui %20 : vector<16x1xi1> to vector<16x1xi32>
    %22 = arith.sitofp %21 : vector<16x1xi32> to vector<16x1xf32>
    %cst_6 = arith.constant 0.000000e+00 : f32
    %23 = vector.broadcast %cst_6 : f32 to vector<16x1xf32>
    %24 = arith.subf %23, %18 : vector<16x1xf32>
    %25 = math.exp %24 : vector<16x1xf32>
    %cst_7 = arith.constant 1.000000e+00 : f32
    %26 = vector.broadcast %cst_7 : f32 to vector<16x1xf32>
    %27 = arith.subf %26, %25 : vector<16x1xf32>
    %cst_8 = arith.constant 0.000000e+00 : f32
    %28 = vector.broadcast %cst_8 : f32 to vector<16x1xf32>
    %29 = arith.maximumf %27, %28 : vector<16x1xf32>
    %cst_9 = arith.constant 0.000000e+00 : f32
    %30 = vector.broadcast %cst_9 : f32 to vector<16x1xf32>
    %31 = arith.cmpf ogt, %29, %30 : vector<16x1xf32>
    %cst_10 = arith.constant 1.000000e-30 : f32
    %32 = vector.broadcast %cst_10 : f32 to vector<16x1xf32>
    %33 = arith.maximumf %29, %32 : vector<16x1xf32>
    %34 = math.log %33 : vector<16x1xf32>
    %cst_11 = arith.constant 1.000000e+00 : f32
    %35 = vector.broadcast %cst_11 : f32 to vector<16x1xf32>
    %36 = arith.mulf %35, %34 : vector<16x1xf32>
    %37 = math.exp %36 : vector<16x1xf32>
    %cst_12 = arith.constant 0.000000e+00 : f32
    %38 = vector.broadcast %cst_12 : f32 to vector<16x1xf32>
    %39 = arith.select %31, %37, %38 : vector<16x1xi1>, vector<16x1xf32>
    %40 = arith.mulf %39, %18 : vector<16x1xf32>
    %41 = arith.mulf %40, %22 : vector<16x1xf32>
    %42 = vector.shape_cast %41 : vector<16x1xf32> to vector<1x16x1xf32>
    %cst_13 = arith.constant dense<0.000000e+00> : vector<1xf32>
    %43 = vector.multi_reduction <add>, %42, %cst_13 [1, 2] : vector<1x16x1xf32> to vector<1xf32>
    %44 = vector.shape_cast %43 : vector<1xf32> to vector<1x1x1xf32>
    %45 = vector.extract %44[0, 0, 0] : f32 from vector<1x1x1xf32>
    %c0_14 = arith.constant 0 : index
    %c0_15 = arith.constant 0 : index
    %46 = vector.load %arg3[%c0_14, %c0_15] : memref<16x16xf32, #tpu.memory_space<vmem>>, vector<16x16xf32>
    %c0_16 = arith.constant 0 : index
    %c0_17 = arith.constant 0 : index
    %47 = vector.load %arg4[%c0_16, %c0_17] : memref<16x1xi32, #tpu.memory_space<vmem>>, vector<16x1xi32>
    %cst_18 = arith.constant dense<0xFF800000> : vector<16xf32>
    %48 = vector.multi_reduction <maximumf>, %46, %cst_18 [1] : vector<16x16xf32> to vector<16xf32>
    %49 = vector.shape_cast %48 : vector<16xf32> to vector<16x1xf32>
    %50 = vector.broadcast %49 : vector<16x1xf32> to vector<16x16xf32>
    %51 = arith.subf %46, %50 : vector<16x16xf32>
    %52 = math.exp %51 : vector<16x16xf32>
    %cst_19 = arith.constant dense<0.000000e+00> : vector<16xf32>
    %53 = vector.multi_reduction <add>, %52, %cst_19 [1] : vector<16x16xf32> to vector<16xf32>
    %54 = vector.shape_cast %53 : vector<16xf32> to vector<16x1xf32>
    %55 = math.log %54 : vector<16x1xf32>
    %56 = arith.addf %49, %55 : vector<16x1xf32>
    %57 = tpu.iota {dimensions = array<i32: 1>} : vector<16x16xi32>
    %58 = vector.broadcast %47 : vector<16x1xi32> to vector<16x16xi32>
    %59 = arith.cmpi eq, %57, %58 : vector<16x16xi32>
    %cst_20 = arith.constant 0.000000e+00 : f32
    %60 = vector.broadcast %cst_20 : f32 to vector<16x16xf32>
    %61 = arith.select %59, %46, %60 : vector<16x16xi1>, vector<16x16xf32>
    %cst_21 = arith.constant dense<0.000000e+00> : vector<16xf32>
    %62 = vector.multi_reduction <add>, %61, %cst_21 [1] : vector<16x16xf32> to vector<16xf32>
    %63 = vector.shape_cast %62 : vector<16xf32> to vector<16x1xf32>
    %64 = arith.subf %56, %63 : vector<16x1xf32>
    %c0_i32_22 = arith.constant 0 : i32
    %65 = vector.broadcast %c0_i32_22 : i32 to vector<16x1xi32>
    %66 = arith.cmpi ne, %47, %65 : vector<16x1xi32>
    %67 = arith.extui %66 : vector<16x1xi1> to vector<16x1xi32>
    %68 = arith.sitofp %67 : vector<16x1xi32> to vector<16x1xf32>
    %69 = arith.mulf %64, %68 : vector<16x1xf32>
    %70 = vector.shape_cast %69 : vector<16x1xf32> to vector<1x16x1xf32>
    %cst_23 = arith.constant dense<0.000000e+00> : vector<1xf32>
    %71 = vector.multi_reduction <add>, %70, %cst_23 [1, 2] : vector<1x16x1xf32> to vector<1xf32>
    %72 = vector.shape_cast %71 : vector<1xf32> to vector<1x1x1xf32>
    %73 = vector.extract %72[0, 0, 0] : f32 from vector<1x1x1xf32>
    %74 = vector.shape_cast %68 : vector<16x1xf32> to vector<1x16x1xf32>
    %cst_24 = arith.constant dense<0.000000e+00> : vector<1xf32>
    %75 = vector.multi_reduction <add>, %74, %cst_24 [1, 2] : vector<1x16x1xf32> to vector<1xf32>
    %76 = vector.shape_cast %75 : vector<1xf32> to vector<1x1x1xf32>
    %77 = vector.extract %76[0, 0, 0] : f32 from vector<1x1x1xf32>
    %78 = tpu.iota {dimensions = array<i32: 1>} : vector<8x128xi32>
    %c0_i32_25 = arith.constant 0 : i32
    %79 = vector.broadcast %c0_i32_25 : i32 to vector<8x128xi32>
    %80 = arith.cmpi eq, %78, %79 : vector<8x128xi32>
    %c1_i32 = arith.constant 1 : i32
    %81 = vector.broadcast %c1_i32 : i32 to vector<8x128xi32>
    %82 = arith.cmpi eq, %78, %81 : vector<8x128xi32>
    %c2_i32 = arith.constant 2 : i32
    %83 = vector.broadcast %c2_i32 : i32 to vector<8x128xi32>
    %84 = arith.cmpi eq, %78, %83 : vector<8x128xi32>
    %cst_26 = arith.constant 0.000000e+00 : f32
    %85 = vector.broadcast %77 : f32 to vector<8x128xf32>
    %86 = vector.broadcast %cst_26 : f32 to vector<8x128xf32>
    %87 = arith.select %84, %85, %86 : vector<8x128xi1>, vector<8x128xf32>
    %88 = vector.broadcast %73 : f32 to vector<8x128xf32>
    %89 = arith.select %82, %88, %87 : vector<8x128xi1>, vector<8x128xf32>
    %90 = vector.broadcast %45 : f32 to vector<8x128xf32>
    %91 = arith.select %80, %90, %89 : vector<8x128xi1>, vector<8x128xf32>
    %c0_27 = arith.constant 0 : index
    %c0_28 = arith.constant 0 : index
    %c0_29 = arith.constant 0 : index
    %92 = vector.load %arg5[%c0_27, %c0_28, %c0_29] : memref<1x8x128xf32, #tpu.memory_space<vmem>>, vector<1x8x128xf32>
    %93 = vector.shape_cast %92 : vector<1x8x128xf32> to vector<8x128xf32>
    %94 = vector.shape_cast %91 : vector<8x128xf32> to vector<1x8x128xf32>
    tpu.vector_store %arg5[%c0_27, %c0_28, %c0_29], %94 {strides = array<i32>} : memref<1x8x128xf32, #tpu.memory_space<vmem>>, vector<1x8x128xf32>,
    return
  }
  func.func @transform_0(%arg0: i32) -> (i32, i32) {
    %c0_i32 = arith.constant 0 : i32
    %c0_i32_0 = arith.constant 0 : i32
    return %arg0, %c0_i32 : i32, i32
  }
  func.func @transform_1(%arg0: i32) -> (i32, i32) {
    %c0_i32 = arith.constant 0 : i32
    %c0_i32_0 = arith.constant 0 : i32
    return %arg0, %c0_i32 : i32, i32
  }
  func.func @transform_2(%arg0: i32) -> (i32, i32) {
    %c0_i32 = arith.constant 0 : i32
    %c0_i32_0 = arith.constant 0 : i32
    return %arg0, %c0_i32 : i32, i32
  }
  func.func @transform_3(%arg0: i32) -> (i32, i32) {
    %c0_i32 = arith.constant 0 : i32
    %c0_i32_0 = arith.constant 0 : i32
    return %arg0, %c0_i32 : i32, i32
  }
  func.func @transform_4(%arg0: i32) -> (i32, i32, i32) {
    %c0_i32 = arith.constant 0 : i32
    %c0_i32_0 = arith.constant 0 : i32
    %c0_i32_1 = arith.constant 0 : i32
    return %arg0, %c0_i32, %c0_i32_0 : i32, i32, i32
  }
}

</mosaic_0001>

<llo_original>
// kernel: tpu_custom_call.1
$region0: #{tpu_custom_call.1}
  #allocation0 [shape = 'u32[]', space=smem, size = 0x4, offset = 0x4, fixed_abs, tag = 'smem constant byte address 0x4 - core index']
  #allocation1 [shape = 'u32[72,128]{1,0:T(1,128)}', space=vmem, size = 0x9000, scoped, tag = 'internal scratch']
  %s0 = inlined_call_operand.vmem [shape: f32[16,2], index: 0, kind: input, shape index: {}]
  %s1 = inlined_call_operand.vmem [shape: s32[16,1], index: 1, kind: input, shape index: {}]
  %s2 = inlined_call_operand.vmem [shape: f32[16,16], index: 2, kind: input, shape index: {}]
  %s3 = inlined_call_operand.vmem [shape: s32[16,1], index: 3, kind: input, shape index: {}]
  %s4 = inlined_call_operand.hbm [shape: f32[1,8,128], index: 4, kind: output, shape index: {}]
  %s5 = sld [smem:[#allocation0]]
  $region26: #{tpu_custom_call.1} parent=0
    _
  %s7 = ssub.s32 1, %s5
  %s8 = scalar_select 0, %s7, %s5
  $region1: #{tpu_custom_call.1} parent=0
    #allocation2 [shape = 'u8[4096]{0}', space=vmem, size = 0x1000, scoped, tag = 'output window, operand 0, single buffered']
    #allocation3 [shape = 's32[1]{0}', space=sflag, size = 0x4, scoped, tag = 'scoped memory for tpu_custom_call.1']
    %9 = vsyncpa [#allocation3], 0
    // Predicated region
    $region2: #{tpu_custom_call.1} parent=1 // pred_check
      _
    $region3: #{tpu_custom_call.1} parent=1 // pred_check_branch
      %11 = sbr.rel (0) target = $region5
    $region4: #{tpu_custom_call.1} parent=1 // pred_region
      _
    $region5: #{tpu_custom_call.1} parent=1 // pred_fallthru
      _
    // Predicated region
    $region6: #{tpu_custom_call.1} parent=1 // pred_check
      _
    $region7: #{tpu_custom_call.1} parent=1 // pred_check_branch
      %13 = sbr.rel (0) target = $region9
    $region8: #{tpu_custom_call.1} parent=1 // pred_region
      _
    $region9: #{tpu_custom_call.1} parent=1 // pred_fallthru
      _
    // Predicated region
    $region10: #{tpu_custom_call.1} parent=1 // pred_check
      _
    $region11: #{tpu_custom_call.1} parent=1 // pred_check_branch
      %15 = sbr.rel (0) target = $region13
    $region12: #{tpu_custom_call.1} parent=1 // pred_region
      _
    $region13: #{tpu_custom_call.1} parent=1 // pred_fallthru
      _
    // Predicated region
    $region14: #{tpu_custom_call.1} parent=1 // pred_check
      _
    $region15: #{tpu_custom_call.1} parent=1 // pred_check_branch
      %17 = sbr.rel (0) target = $region17
    $region16: #{tpu_custom_call.1} parent=1 // pred_region
      _
    $region17: #{tpu_custom_call.1} parent=1 // pred_fallthru
      _
    %v18 = vld [vmem:[%s0] sm:$0xff]
    %v19 = vld [vmem:[%s0 + $0x8] sm:$0xff]
    %v20 = vld [vmem:[%s1] sm:$0xff]
    %v21 = vld [vmem:[%s1 + $0x8] sm:$0xff]
    %vm22 = vcmask 15360
    %v23 = vsel %vm22, %v18, -inf
    %24 = vmax.xlane.f32.xlu0 %v23
    %v25 = vpop.xlane.xlu0 %24
    %v26 = vsel %vm22, %v19, -inf
    %27 = vmax.xlane.f32.xlu0 %v26
    %v28 = vpop.xlane.xlu0 %27
    %v29 = vsub.f32 %v18, %v25
    %v30 = vsub.f32 %v19, %v28
    %v31 = vmul.f32 %v29, 1.442695
    %v32 = vpow.pop %v31
    %v33 = vmul.f32 %v30, 1.442695
    %v34 = vpow.pop %v33
    %v35 = vsel %vm22, %v32, 0.0
    %36 = vadd.xlane.f32.xlu0 %v35
    %v37 = vpop.xlane.xlu0 %36
    %v38 = vsel %vm22, %v34, 0.0
    %39 = vadd.xlane.f32.xlu0 %v38
    %v40 = vpop.xlane.xlu0 %39
    %v41 = vlog2.pop %v37
    %v42 = vmul.f32 %v41, 0.6931472
    %v43 = vlog2.pop %v40
    %v44 = vmul.f32 %v43, 0.6931472
    %v45 = vadd.f32 %v25, %v42
    %v46 = vadd.f32 %v28, %v44
    %v47 = vlaneseq
    %v48 = vand.u32 %v47, 127
    %49 = vset.pattern.permute.xlu0 0
    %50 = vperm.xlu0 %49, %v20
    %v51 = vpop.permute.xlu0 %50
    %52 = vset.pattern.permute.xlu0 0
    %53 = vperm.xlu0 %52, %v21
    %v54 = vpop.permute.xlu0 %53
    %vm55 = vcmp.eq.s32.totalorder %v48, %v51
    %vm56 = vcmp.eq.s32.totalorder %v48, %v54
    %v57 = vsel %vm55, %v18, 0.0
    %v58 = vsel %vm56, %v19, 0.0
    %v59 = vsel %vm22, %v57, 0.0
    %60 = vadd.xlane.f32.xlu0 %v59
    %v61 = vpop.xlane.xlu0 %60
    %v62 = vsel %vm22, %v58, 0.0
    %63 = vadd.xlane.f32.xlu0 %v62
    %v64 = vpop.xlane.xlu0 %63
    %v65 = vsub.f32 %v45, %v61
    %v66 = vsub.f32 %v46, %v64
    %vm67 = vcmp.ge.s32.totalorder %v20, 0
    %vm68 = vcmp.ge.s32.totalorder %v21, 0
    %v69 = vsel %vm67, 1, 0
    %v70 = vsel %vm68, 1, 0
    %v71 = vcvt.s32.f32 %v69
    %v72 = vcvt.s32.f32 %v70
    %v73 = vsub.f32 0.0, %v65
    %v74 = vsub.f32 0.0, %v66
    %v75 = vmul.f32 %v73, 1.442695
    %v76 = vpow.pop %v75
    %v77 = vmul.f32 %v74, 1.442695
    %v78 = vpow.pop %v77
    %v79 = vsub.f32 1.0, %v76
    %v80 = vsub.f32 1.0, %v78
    %v81 = vmax.f32 %v79, 0.0
    %v82 = vmax.f32 %v80, 0.0
    %vm83 = vcmp.gt.f32.partialorder %v81, 0.0
    %vm84 = vcmp.gt.f32.partialorder %v82, 0.0
    %v85 = vmax.f32 %v81, 1e-30
    %v86 = vmax.f32 %v82, 1e-30
    %v87 = vlog2.pop %v85
    %v88 = vmul.f32 %v87, 0.6931472
    %v89 = vlog2.pop %v86
    %v90 = vmul.f32 %v89, 0.6931472
    %v91 = vmul.f32 %v88, 1.442695
    %v92 = vpow.pop %v91
    %v93 = vmul.f32 %v90, 1.442695
    %v94 = vpow.pop %v93
    %v95 = vsel %vm83, %v92, 0.0
    %v96 = vsel %vm84, %v94, 0.0
    %v97 = vmul.f32 %v95, %v65
    %v98 = vmul.f32 %v96, %v66
    %v99 = vmul.f32 %v97, %v71
    %v100 = vmul.f32 %v98, %v72
    %vm101 = vcmask 7168
    %v102 = vsel %vm101, %v99, 0.0
    %v103 = vsel %vm101, %v100, 0.0
    %v104 = vadd.f32 %v102, %v103
    %105 = vadd.xlane.f32.xlu0 %v104
    %v106 = vpop.xlane.xlu0 %105
    %v107 = vrot.slane %v106, 4
    %v108 = vadd.f32 %v106, %v107
    %v109 = vrot.slane %v108, 2
    %v110 = vadd.f32 %v108, %v109
    %v111 = vrot.slane %v110, 1
    %v112 = vadd.f32 %v110, %v111
    %s113 = vtos %v112
    %v114 = vld [vmem:[%s2] sm:$0xff]
    %v115 = vld [vmem:[%s2 + $0x8] sm:$0xff]
    %v116 = vld [vmem:[%s3] sm:$0xff]
    %v117 = vld [vmem:[%s3 + $0x8] sm:$0xff]
    %vm118 = vcmask 130048
    %v119 = vsel %vm118, %v114, -inf
    %120 = vmax.xlane.f32.xlu0 %v119
    %v121 = vpop.xlane.xlu0 %120
    %v122 = vsel %vm118, %v115, -inf
    %123 = vmax.xlane.f32.xlu0 %v122
    %v124 = vpop.xlane.xlu0 %123
    %v125 = vsub.f32 %v114, %v121
    %v126 = vsub.f32 %v115, %v124
    %v127 = vmul.f32 %v125, 1.442695
    %v128 = vpow.pop %v127
    %v129 = vmul.f32 %v126, 1.442695
    %v130 = vpow.pop %v129
    %v131 = vsel %vm118, %v128, 0.0
    %132 = vadd.xlane.f32.xlu0 %v131
    %v133 = vpop.xlane.xlu0 %132
    %v134 = vsel %vm118, %v130, 0.0
    %135 = vadd.xlane.f32.xlu0 %v134
    %v136 = vpop.xlane.xlu0 %135
    %v137 = vlog2.pop %v133
    %v138 = vmul.f32 %v137, 0.6931472
    %v139 = vlog2.pop %v136
    %v140 = vmul.f32 %v139, 0.6931472
    %v141 = vadd.f32 %v121, %v138
    %v142 = vadd.f32 %v124, %v140
    %143 = vset.pattern.permute.xlu0 0
    %144 = vperm.xlu0 %143, %v116
    %v145 = vpop.permute.xlu0 %144
    %146 = vset.pattern.permute.xlu0 0
    %147 = vperm.xlu0 %146, %v117
    %v148 = vpop.permute.xlu0 %147
    %vm149 = vcmp.eq.s32.totalorder %v48, %v145
    %vm150 = vcmp.eq.s32.totalorder %v48, %v148
    %v151 = vsel %vm149, %v114, 0.0
    %v152 = vsel %vm150, %v115, 0.0
    %v153 = vsel %vm118, %v151, 0.0
    %154 = vadd.xlane.f32.xlu0 %v153
    %v155 = vpop.xlane.xlu0 %154
    %v156 = vsel %vm118, %v152, 0.0
    %157 = vadd.xlane.f32.xlu0 %v156
    %v158 = vpop.xlane.xlu0 %157
    %v159 = vsub.f32 %v141, %v155
    %v160 = vsub.f32 %v142, %v158
    %vm161 = vcmp.ne.s32.totalorder %v116, 0
    %vm162 = vcmp.ne.s32.totalorder %v117, 0
    %v163 = vsel %vm161, 1, 0
    %v164 = vsel %vm162, 1, 0
    %v165 = vcvt.s32.f32 %v163
    %v166 = vcvt.s32.f32 %v164
    %v167 = vmul.f32 %v159, %v165
    %v168 = vmul.f32 %v160, %v166
    %v169 = vsel %vm101, %v167, 0.0
    %v170 = vsel %vm101, %v168, 0.0
    %v171 = vadd.f32 %v169, %v170
    %172 = vadd.xlane.f32.xlu0 %v171
    %v173 = vpop.xlane.xlu0 %172
    %v174 = vrot.slane %v173, 4
    %v175 = vadd.f32 %v173, %v174
    %v176 = vrot.slane %v175, 2
    %v177 = vadd.f32 %v175, %v176
    %v178 = vrot.slane %v177, 1
    %v179 = vadd.f32 %v177, %v178
    %s180 = vtos %v179
    %v181 = vsel %vm101, %v165, 0.0
    %v182 = vsel %vm101, %v166, 0.0
    %v183 = vadd.f32 %v181, %v182
    %184 = vadd.xlane.f32.xlu0 %v183
    %v185 = vpop.xlane.xlu0 %184
    %v186 = vrot.slane %v185, 4
    %v187 = vadd.f32 %v185, %v186
    %v188 = vrot.slane %v187, 2
    %v189 = vadd.f32 %v187, %v188
    %v190 = vrot.slane %v189, 1
    %v191 = vadd.f32 %v189, %v190
    %s192 = vtos %v191
    %vm193 = vcmp.eq.s32.totalorder %v48, 0
    %vm194 = vcmp.eq.s32.totalorder %v48, 1
    %vm195 = vcmp.eq.s32.totalorder %v48, 2
    %v196 = vstv %s192
    %v197 = vsel %vm195, %v196, 0.0
    %v198 = vstv %s180
    %v199 = vsel %vm194, %v198, %v197
    %v200 = vstv %s113
    %v201 = vsel %vm193, %v200, %v199
    %202 = vst [vmem:[#allocation2] sm:$0xff] %v201
    // Predicated region
    $region18: #{tpu_custom_call.1} parent=1 // pred_check
      _
    $region19: #{tpu_custom_call.1} parent=1 // pred_check_branch
      %204 = sbr.rel (0) target = $region21
    $region20: #{tpu_custom_call.1} parent=1 // pred_region
      %206 = vsyncadd [#allocation3], 0
      %s208 = sshll.u32 [#allocation2], 4
      %s209 = int_to_ptr.vmem [resolvable:$true] %s208
      %s210 = sshll.u32 %s4, 4
      %s211 = int_to_ptr.hbm [resolvable:$true] %s210
      %213 = dma.vmem_to_hbm [thread:$0]  %s209, 128, %s211, [#allocation3]
    $region21: #{tpu_custom_call.1} parent=1 // pred_fallthru
      _
    // Predicated region
    $region22: #{tpu_custom_call.1} parent=1 // pred_check
      _
    $region23: #{tpu_custom_call.1} parent=1 // pred_check_branch
      %215 = sbr.rel (0) target = $region25
    $region24: #{tpu_custom_call.1} parent=1 // pred_region
      %217 = dma.done [#allocation3], 128
    $region25: #{tpu_custom_call.1} parent=1 // pred_fallthru
      _
    %218 = vsyncpa [#allocation3], 1

</llo_original>
